<compile_context>
chip_gen: v7x
topology: tpu7x:2x2x1
jax: 0.10.0
libtpu: 0.0.40
codegen_flags: <defaults>
</compile_context>

<pallas_src>
import functools

import jax
import jax.numpy as jnp
from jax.experimental import pallas as pl
from jax.experimental.pallas import tpu as pltpu


def att_kernel(q_ref, k_ref, o_ref, *, n_interest, hidden):
    # q_ref: (bt, H)        queries for this batch tile
    # k_ref: (bt, N*H)      keys/values, lane-dense flattened layout
    # o_ref: (bt, H)        attended outputs
    q = q_ref[...].astype(jnp.float32)            # (bt, H)
    k = k_ref[...].astype(jnp.float32)            # (bt, N*H)

    # Unrolled over N: scores_n = <q, k_n> / 0.1, kept as (bt, 1) columns.
    ks = []
    scores = []
    for n in range(n_interest):
        kn = k[:, n * hidden:(n + 1) * hidden]    # (bt, H) static lane slice
        ks.append(kn)
        s = jnp.sum(q * kn, axis=-1, keepdims=True) / 0.1   # (bt, 1)
        scores.append(s)

    # Numerically-stable softmax over the (unrolled) interest axis.
    m = scores[0]
    for s in scores[1:]:
        m = jnp.maximum(m, s)
    exps = [jnp.exp(s - m) for s in scores]
    denom = exps[0]
    for e in exps[1:]:
        denom = denom + e
    inv = 1.0 / denom                             # exact; (bt, 1) is essentially free

    # interest = sum_n probs_n * k_n, f32 accumulation, (bt, H) live data only.
    out = (exps[0] * inv) * ks[0]
    for n in range(1, n_interest):
        out = out + (exps[n] * inv) * ks[n]
    o_ref[...] = out.astype(o_ref.dtype)


def _pick_batch_tile(B, block_b, sublane):
    """Batch-tile size: multiple of `sublane`, <= block_b, >=~8 grid steps."""
    if B <= max(sublane, 16):
        return B                                   # single full block (full-dim exception)
    target = -(-B // 8)                            # cdiv(B, 8): >=8 steps for 2 TCs on v7x
    bt = -(-target // sublane) * sublane           # round up to sublane multiple
    bt = max(sublane, min(bt, block_b))
    return bt


def att_layer_pallas(qvec, kmat, block_b=2048):
    """qvec: (B, H), kmat: (B, N, H) -> (B, H)  (or (H,) when B == 1, matching .squeeze())."""
    B, H = qvec.shape
    _, N, H2 = kmat.shape
    assert H2 == H

    # Free contiguous reshape -> lane-dense kmat layout for the dominant DMA.
    kflat = kmat.reshape(B, N * H)

    itemsize = jnp.dtype(qvec.dtype).itemsize
    sublane = 16 if itemsize <= 2 else 8           # bf16/f16 sublane packing
    bt = _pick_batch_tile(B, block_b, sublane)
    grid = (pl.cdiv(B, bt),)                       # ragged tail handled by partial blocks

    cost = pl.CostEstimate(
        flops=4 * B * N * H,
        transcendentals=B * N,
        bytes_accessed=B * (N * H + 2 * H) * itemsize,
    )

    kern = functools.partial(att_kernel, n_interest=N, hidden=H)
    out = pl.pallas_call(
        kern,
        out_shape=jax.ShapeDtypeStruct((B, H), qvec.dtype),
        grid_spec=pl.GridSpec(
            grid=grid,
            in_specs=[
                pl.BlockSpec((bt, H), lambda i: (i, 0)),
                pl.BlockSpec((bt, N * H), lambda i: (i, 0)),
            ],
            out_specs=pl.BlockSpec((bt, H), lambda i: (i, 0)),
        ),
        compiler_params=pltpu.CompilerParams(
            dimension_semantics=("parallel",)),
        cost_estimate=cost,
    )(qvec, kflat)

    # PyTorch .squeeze() removes all size-1 dims; for B == 1 this gives (H,).
    if B == 1:
        return out.reshape(H)
    return out


def att_layer_reference(qvec, kmat):
    """Pure-JAX reference mirroring the PyTorch forward (exact f32 VPU math)."""
    q32 = qvec.astype(jnp.float32)
    k32 = kmat.astype(jnp.float32)
    scores = jnp.sum(q32[:, None, :] * k32, axis=-1) / 0.1          # (B, N)
    probs = jax.nn.softmax(scores, axis=-1)
    out = jnp.sum(probs[:, :, None] * k32, axis=1)                  # (B, H)
    return out.astype(qvec.dtype)


def make_params(hidden_dim, key):
    """Deterministic params for the (unused-in-forward) nn.Linear(hidden, hidden)."""
    kw, kb = jax.random.split(key)
    bound = 1.0 / jnp.sqrt(hidden_dim)
    w = jax.random.uniform(kw, (hidden_dim, hidden_dim), jnp.float32, -bound, bound)
    b = jax.random.uniform(kb, (hidden_dim,), jnp.float32, -bound, bound)
    return {"linear_w": w, "linear_b": b}   # not used in forward (matches PyTorch)


if __name__ == "__main__":
    B, N, H = 2, 8, 32   # batch, n_interest, hidden_dim

    key = jax.random.PRNGKey(0)
    kq, kk, kp = jax.random.split(key, 3)
    qvec = jax.random.normal(kq, (B, H), dtype=jnp.float32)
    kmat = jax.random.normal(kk, (B, N, H), dtype=jnp.float32)
    _params = make_params(H, kp)   # parity with module __init__; unused in forward

    out = jax.block_until_ready(att_layer_pallas(qvec, kmat))
    ref = att_layer_reference(qvec, kmat)
    assert out.shape == (B, H)
    assert jnp.allclose(out, ref, atol=1e-3, rtol=1e-3), "mismatch vs reference (small batch)"

    # Batch-tiled path: multi-step grid plus a ragged tail (no padding copy).
    B2 = 1000
    kq2, kk2 = jax.random.split(jax.random.PRNGKey(1))
    q2 = jax.random.normal(kq2, (B2, H), dtype=jnp.float32)
    k2 = jax.random.normal(kk2, (B2, N, H), dtype=jnp.float32)
    out2 = jax.block_until_ready(att_layer_pallas(q2, k2))
    ref2 = att_layer_reference(q2, k2)
    assert out2.shape == (B2, H)
    assert jnp.allclose(out2, ref2, atol=1e-3, rtol=1e-3), "mismatch vs reference (tiled batch)"

    # bf16 inputs (kernel upcasts to f32 internally; output rounded to bf16).
    q3 = q2.astype(jnp.bfloat16)
    k3 = k2.astype(jnp.bfloat16)
    out3 = jax.block_until_ready(att_layer_pallas(q3, k3))
    ref3 = att_layer_reference(q3, k3)
    assert out3.shape == (B2, H) and out3.dtype == jnp.bfloat16
    assert jnp.allclose(out3.astype(jnp.float32), ref3.astype(jnp.float32),
                        atol=3e-2, rtol=3e-2), "mismatch vs reference (bf16)"

    print("KERNEL_OK")
</pallas_src>

<mosaic_0001>
module attributes {stable_mosaic.version = 11 : i64} {
  func.func @att_kernel(%arg0: i32, %arg1: memref<2x32xf32, #tpu.memory_space<vmem>>, %arg2: memref<2x256xf32, #tpu.memory_space<vmem>>, %arg3: memref<2x32xf32, #tpu.memory_space<vmem>>) attributes {dimension_semantics = [#tpu.dimension_semantics<parallel>], iteration_bounds = array<i64: 1>, scalar_prefetch = 0 : i64, scratch_operands = 0 : i64, tpu.core_type = #tpu.core_type<tc>, window_params = [{transform_indices = @transform_0, window_bounds = array<i64: 2, 32>}, {transform_indices = @transform_1, window_bounds = array<i64: 2, 256>}, {transform_indices = @transform_2, window_bounds = array<i64: 2, 32>}]} {
    %c0 = arith.constant 0 : index
    %c0_0 = arith.constant 0 : index
    %0 = vector.load %arg1[%c0, %c0_0] : memref<2x32xf32, #tpu.memory_space<vmem>>, vector<2x32xf32>
    %c0_1 = arith.constant 0 : index
    %c0_2 = arith.constant 0 : index
    %1 = vector.load %arg2[%c0_1, %c0_2] : memref<2x256xf32, #tpu.memory_space<vmem>>, vector<2x256xf32>
    %2 = vector.extract_strided_slice %1 {offsets = [0, 0], sizes = [2, 32], strides = [1, 1]} : vector<2x256xf32> to vector<2x32xf32>
    %3 = arith.mulf %0, %2 : vector<2x32xf32>
    %cst = arith.constant dense<0.000000e+00> : vector<2xf32>
    %4 = vector.multi_reduction <add>, %3, %cst [1] : vector<2x32xf32> to vector<2xf32>
    %5 = vector.shape_cast %4 : vector<2xf32> to vector<2x1xf32>
    %cst_3 = arith.constant 1.000000e-01 : f32
    %6 = vector.broadcast %cst_3 : f32 to vector<2x1xf32>
    %7 = arith.divf %5, %6 : vector<2x1xf32>
    %8 = vector.extract_strided_slice %1 {offsets = [0, 32], sizes = [2, 32], strides = [1, 1]} : vector<2x256xf32> to vector<2x32xf32>
    %9 = arith.mulf %0, %8 : vector<2x32xf32>
    %cst_4 = arith.constant dense<0.000000e+00> : vector<2xf32>
    %10 = vector.multi_reduction <add>, %9, %cst_4 [1] : vector<2x32xf32> to vector<2xf32>
    %11 = vector.shape_cast %10 : vector<2xf32> to vector<2x1xf32>
    %cst_5 = arith.constant 1.000000e-01 : f32
    %12 = vector.broadcast %cst_5 : f32 to vector<2x1xf32>
    %13 = arith.divf %11, %12 : vector<2x1xf32>
    %14 = vector.extract_strided_slice %1 {offsets = [0, 64], sizes = [2, 32], strides = [1, 1]} : vector<2x256xf32> to vector<2x32xf32>
    %15 = arith.mulf %0, %14 : vector<2x32xf32>
    %cst_6 = arith.constant dense<0.000000e+00> : vector<2xf32>
    %16 = vector.multi_reduction <add>, %15, %cst_6 [1] : vector<2x32xf32> to vector<2xf32>
    %17 = vector.shape_cast %16 : vector<2xf32> to vector<2x1xf32>
    %cst_7 = arith.constant 1.000000e-01 : f32
    %18 = vector.broadcast %cst_7 : f32 to vector<2x1xf32>
    %19 = arith.divf %17, %18 : vector<2x1xf32>
    %20 = vector.extract_strided_slice %1 {offsets = [0, 96], sizes = [2, 32], strides = [1, 1]} : vector<2x256xf32> to vector<2x32xf32>
    %21 = arith.mulf %0, %20 : vector<2x32xf32>
    %cst_8 = arith.constant dense<0.000000e+00> : vector<2xf32>
    %22 = vector.multi_reduction <add>, %21, %cst_8 [1] : vector<2x32xf32> to vector<2xf32>
    %23 = vector.shape_cast %22 : vector<2xf32> to vector<2x1xf32>
    %cst_9 = arith.constant 1.000000e-01 : f32
    %24 = vector.broadcast %cst_9 : f32 to vector<2x1xf32>
    %25 = arith.divf %23, %24 : vector<2x1xf32>
    %26 = vector.extract_strided_slice %1 {offsets = [0, 128], sizes = [2, 32], strides = [1, 1]} : vector<2x256xf32> to vector<2x32xf32>
    %27 = arith.mulf %0, %26 : vector<2x32xf32>
    %cst_10 = arith.constant dense<0.000000e+00> : vector<2xf32>
    %28 = vector.multi_reduction <add>, %27, %cst_10 [1] : vector<2x32xf32> to vector<2xf32>
    %29 = vector.shape_cast %28 : vector<2xf32> to vector<2x1xf32>
    %cst_11 = arith.constant 1.000000e-01 : f32
    %30 = vector.broadcast %cst_11 : f32 to vector<2x1xf32>
    %31 = arith.divf %29, %30 : vector<2x1xf32>
    %32 = vector.extract_strided_slice %1 {offsets = [0, 160], sizes = [2, 32], strides = [1, 1]} : vector<2x256xf32> to vector<2x32xf32>
    %33 = arith.mulf %0, %32 : vector<2x32xf32>
    %cst_12 = arith.constant dense<0.000000e+00> : vector<2xf32>
    %34 = vector.multi_reduction <add>, %33, %cst_12 [1] : vector<2x32xf32> to vector<2xf32>
    %35 = vector.shape_cast %34 : vector<2xf32> to vector<2x1xf32>
    %cst_13 = arith.constant 1.000000e-01 : f32
    %36 = vector.broadcast %cst_13 : f32 to vector<2x1xf32>
    %37 = arith.divf %35, %36 : vector<2x1xf32>
    %38 = vector.extract_strided_slice %1 {offsets = [0, 192], sizes = [2, 32], strides = [1, 1]} : vector<2x256xf32> to vector<2x32xf32>
    %39 = arith.mulf %0, %38 : vector<2x32xf32>
    %cst_14 = arith.constant dense<0.000000e+00> : vector<2xf32>
    %40 = vector.multi_reduction <add>, %39, %cst_14 [1] : vector<2x32xf32> to vector<2xf32>
    %41 = vector.shape_cast %40 : vector<2xf32> to vector<2x1xf32>
    %cst_15 = arith.constant 1.000000e-01 : f32
    %42 = vector.broadcast %cst_15 : f32 to vector<2x1xf32>
    %43 = arith.divf %41, %42 : vector<2x1xf32>
    %44 = vector.extract_strided_slice %1 {offsets = [0, 224], sizes = [2, 32], strides = [1, 1]} : vector<2x256xf32> to vector<2x32xf32>
    %45 = arith.mulf %0, %44 : vector<2x32xf32>
    %cst_16 = arith.constant dense<0.000000e+00> : vector<2xf32>
    %46 = vector.multi_reduction <add>, %45, %cst_16 [1] : vector<2x32xf32> to vector<2xf32>
    %47 = vector.shape_cast %46 : vector<2xf32> to vector<2x1xf32>
    %cst_17 = arith.constant 1.000000e-01 : f32
    %48 = vector.broadcast %cst_17 : f32 to vector<2x1xf32>
    %49 = arith.divf %47, %48 : vector<2x1xf32>
    %50 = arith.maximumf %7, %13 : vector<2x1xf32>
    %51 = arith.maximumf %50, %19 : vector<2x1xf32>
    %52 = arith.maximumf %51, %25 : vector<2x1xf32>
    %53 = arith.maximumf %52, %31 : vector<2x1xf32>
    %54 = arith.maximumf %53, %37 : vector<2x1xf32>
    %55 = arith.maximumf %54, %43 : vector<2x1xf32>
    %56 = arith.maximumf %55, %49 : vector<2x1xf32>
    %57 = arith.subf %7, %56 : vector<2x1xf32>
    %58 = math.exp %57 : vector<2x1xf32>
    %59 = arith.subf %13, %56 : vector<2x1xf32>
    %60 = math.exp %59 : vector<2x1xf32>
    %61 = arith.subf %19, %56 : vector<2x1xf32>
    %62 = math.exp %61 : vector<2x1xf32>
    %63 = arith.subf %25, %56 : vector<2x1xf32>
    %64 = math.exp %63 : vector<2x1xf32>
    %65 = arith.subf %31, %56 : vector<2x1xf32>
    %66 = math.exp %65 : vector<2x1xf32>
    %67 = arith.subf %37, %56 : vector<2x1xf32>
    %68 = math.exp %67 : vector<2x1xf32>
    %69 = arith.subf %43, %56 : vector<2x1xf32>
    %70 = math.exp %69 : vector<2x1xf32>
    %71 = arith.subf %49, %56 : vector<2x1xf32>
    %72 = math.exp %71 : vector<2x1xf32>
    %73 = arith.addf %58, %60 : vector<2x1xf32>
    %74 = arith.addf %73, %62 : vector<2x1xf32>
    %75 = arith.addf %74, %64 : vector<2x1xf32>
    %76 = arith.addf %75, %66 : vector<2x1xf32>
    %77 = arith.addf %76, %68 : vector<2x1xf32>
    %78 = arith.addf %77, %70 : vector<2x1xf32>
    %79 = arith.addf %78, %72 : vector<2x1xf32>
    %cst_18 = arith.constant 1.000000e+00 : f32
    %80 = vector.broadcast %cst_18 : f32 to vector<2x1xf32>
    %81 = arith.divf %80, %79 : vector<2x1xf32>
    %82 = arith.mulf %58, %81 : vector<2x1xf32>
    %83 = vector.broadcast %82 : vector<2x1xf32> to vector<2x32xf32>
    %84 = arith.mulf %83, %2 : vector<2x32xf32>
    %85 = arith.mulf %60, %81 : vector<2x1xf32>
    %86 = vector.broadcast %85 : vector<2x1xf32> to vector<2x32xf32>
    %87 = arith.mulf %86, %8 : vector<2x32xf32>
    %88 = arith.addf %84, %87 : vector<2x32xf32>
    %89 = arith.mulf %62, %81 : vector<2x1xf32>
    %90 = vector.broadcast %89 : vector<2x1xf32> to vector<2x32xf32>
    %91 = arith.mulf %90, %14 : vector<2x32xf32>
    %92 = arith.addf %88, %91 : vector<2x32xf32>
    %93 = arith.mulf %64, %81 : vector<2x1xf32>
    %94 = vector.broadcast %93 : vector<2x1xf32> to vector<2x32xf32>
    %95 = arith.mulf %94, %20 : vector<2x32xf32>
    %96 = arith.addf %92, %95 : vector<2x32xf32>
    %97 = arith.mulf %66, %81 : vector<2x1xf32>
    %98 = vector.broadcast %97 : vector<2x1xf32> to vector<2x32xf32>
    %99 = arith.mulf %98, %26 : vector<2x32xf32>
    %100 = arith.addf %96, %99 : vector<2x32xf32>
    %101 = arith.mulf %68, %81 : vector<2x1xf32>
    %102 = vector.broadcast %101 : vector<2x1xf32> to vector<2x32xf32>
    %103 = arith.mulf %102, %32 : vector<2x32xf32>
    %104 = arith.addf %100, %103 : vector<2x32xf32>
    %105 = arith.mulf %70, %81 : vector<2x1xf32>
    %106 = vector.broadcast %105 : vector<2x1xf32> to vector<2x32xf32>
    %107 = arith.mulf %106, %38 : vector<2x32xf32>
    %108 = arith.addf %104, %107 : vector<2x32xf32>
    %109 = arith.mulf %72, %81 : vector<2x1xf32>
    %110 = vector.broadcast %109 : vector<2x1xf32> to vector<2x32xf32>
    %111 = arith.mulf %110, %44 : vector<2x32xf32>
    %112 = arith.addf %108, %111 : vector<2x32xf32>
    %c0_19 = arith.constant 0 : index
    %c0_20 = arith.constant 0 : index
    %113 = vector.load %arg3[%c0_19, %c0_20] : memref<2x32xf32, #tpu.memory_space<vmem>>, vector<2x32xf32>
    tpu.vector_store %arg3[%c0_19, %c0_20], %112 {strides = array<i32>} : memref<2x32xf32, #tpu.memory_space<vmem>>, vector<2x32xf32>,
    return
  }
  func.func @transform_0(%arg0: i32) -> (i32, i32) {
    %c0_i32 = arith.constant 0 : i32
    %c0_i32_0 = arith.constant 0 : i32
    return %arg0, %c0_i32 : i32, i32
  }
  func.func @transform_1(%arg0: i32) -> (i32, i32) {
    %c0_i32 = arith.constant 0 : i32
    %c0_i32_0 = arith.constant 0 : i32
    return %arg0, %c0_i32 : i32, i32
  }
  func.func @transform_2(%arg0: i32) -> (i32, i32) {
    %c0_i32 = arith.constant 0 : i32
    %c0_i32_0 = arith.constant 0 : i32
    return %arg0, %c0_i32 : i32, i32
  }
}

</mosaic_0001>

<llo_original>
// kernel: tpu_custom_call.1
$region0: #{tpu_custom_call.1}
  #allocation0 [shape = 'u32[]', space=smem, size = 0x4, offset = 0x4, fixed_abs, tag = 'smem constant byte address 0x4 - core index']
  #allocation1 [shape = 'u32[144,128]{1,0:T(1,128)}', space=vmem, size = 0x12000, scoped, tag = 'internal scratch']
  %s0 = inlined_call_operand.hbm [shape: f32[2,32], index: 0, kind: input, shape index: {}]
  %s1 = inlined_call_operand.hbm [shape: f32[2,256], index: 1, kind: input, shape index: {}]
  %s2 = inlined_call_operand.hbm [shape: f32[2,32], index: 2, kind: output, shape index: {}]
  %s3 = sld [smem:[#allocation0]]
  $region26: #{tpu_custom_call.1} parent=0
    _
  %s5 = ssub.s32 1, %s3
  %s6 = scalar_select 0, %s5, %s3
  $region1: #{tpu_custom_call.1} parent=0
    #allocation2 [shape = 'u8[1024]{0}', space=vmem, size = 0x400, scoped, tag = 'input window, operand 0, single buffered']
    #allocation3 [shape = 's32[1]{0}', space=sflag, size = 0x4, scoped, tag = 'scoped memory for tpu_custom_call.1']
    #allocation4 [shape = 's32[1]{0}', space=sflag, size = 0x4, scoped, tag = 'scoped memory for tpu_custom_call.1']
    #allocation5 [shape = 'u8[2048]{0}', space=vmem, size = 0x800, scoped, tag = 'input window, operand 1, single buffered']
    #allocation6 [shape = 's32[1]{0}', space=sflag, size = 0x4, scoped, tag = 'scoped memory for tpu_custom_call.1']
    #allocation7 [shape = 'u8[1024]{0}', space=vmem, size = 0x400, scoped, tag = 'output window, operand 0, single buffered']
    %7 = vsyncpa [#allocation3], 0
    %8 = vsyncpa [#allocation6], 0
    %9 = vsyncpa [#allocation4], 0
    // Predicated region
    $region2: #{tpu_custom_call.1} parent=1 // pred_check
      _
    $region3: #{tpu_custom_call.1} parent=1 // pred_check_branch
      %11 = sbr.rel (0) target = $region5
    $region4: #{tpu_custom_call.1} parent=1 // pred_region
      %s13 = ssub.s32 32, 32
      %14 = vsyncadd [#allocation3], %s13
      %s16 = sshll.u32 [#allocation2], 4
      %s17 = int_to_ptr.vmem [resolvable:$true] %s16
      %19 = dma.hbm_to_vmem [thread:$0]  %s0, 32, %s17, [#allocation3]
    $region5: #{tpu_custom_call.1} parent=1 // pred_fallthru
      _
    // Predicated region
    $region6: #{tpu_custom_call.1} parent=1 // pred_check
      _
    $region7: #{tpu_custom_call.1} parent=1 // pred_check_branch
      %21 = sbr.rel (0) target = $region9
    $region8: #{tpu_custom_call.1} parent=1 // pred_region
      %s23 = ssub.s32 64, 64
      %24 = vsyncadd [#allocation6], %s23
      %s26 = sshll.u32 [#allocation5], 4
      %s27 = int_to_ptr.vmem [resolvable:$true] %s26
      %29 = dma.hbm_to_vmem [thread:$0]  %s1, 64, %s27, [#allocation6]
    $region9: #{tpu_custom_call.1} parent=1 // pred_fallthru
      _
    // Predicated region
    $region10: #{tpu_custom_call.1} parent=1 // pred_check
      _
    $region11: #{tpu_custom_call.1} parent=1 // pred_check_branch
      %31 = sbr.rel (0) target = $region13
    $region12: #{tpu_custom_call.1} parent=1 // pred_region
      %32 = dma.done [#allocation3], 32
    $region13: #{tpu_custom_call.1} parent=1 // pred_fallthru
      _
    // Predicated region
    $region14: #{tpu_custom_call.1} parent=1 // pred_check
      _
    $region15: #{tpu_custom_call.1} parent=1 // pred_check_branch
      %34 = sbr.rel (0) target = $region17
    $region16: #{tpu_custom_call.1} parent=1 // pred_region
      %35 = dma.done [#allocation6], 64
    $region17: #{tpu_custom_call.1} parent=1 // pred_fallthru
      _
    %v36 = vld [vmem:[#allocation2] sm:$0x3]
    %v37 = vld [vmem:[#allocation5] sm:$0xf]
    %v38 = vmul.f32 %v36, %v37
    %vm39 = vcmask 254976
    %v40 = vsel %vm39, %v38, 0.0
    %41 = vadd.xlane.f32.xlu0 %v40
    %v42 = vpop.xlane.xlu0 %41
    %v43 = vrcp.pop 0.1
    %v44 = vmul.f32 %v42, %v43
    %v47 = vunpack.c.l.s4 1983009808
    %v48 = vunpack.c.0.s8 %v47
    %v49 = vlaneseq
    %v50 = vshrl.u32 %v49, 7
    %v51 = vsub.s32 %v48, %v50
    %v52 = vrot.slane %v37, %v51
    %53 = vrot.lane.b32.xlu0 %v52, 96
    %v54 = vpop.permute.xlu0 %53
    %v56 = vmul.f32 %v36, %v54
    %v57 = vsel %vm39, %v56, 0.0
    %58 = vadd.xlane.f32.xlu0 %v57
    %v59 = vpop.xlane.xlu0 %58
    %v60 = vmul.f32 %v59, %v43
    %61 = vrot.lane.b32.xlu0 %v52, 64
    %v62 = vpop.permute.xlu0 %61
    %v64 = vmul.f32 %v36, %v62
    %v65 = vsel %vm39, %v64, 0.0
    %66 = vadd.xlane.f32.xlu0 %v65
    %v67 = vpop.xlane.xlu0 %66
    %v68 = vmul.f32 %v67, %v43
    %69 = vrot.lane.b32.xlu0 %v52, 32
    %v70 = vpop.permute.xlu0 %69
    %v72 = vmul.f32 %v36, %v70
    %v73 = vsel %vm39, %v72, 0.0
    %74 = vadd.xlane.f32.xlu0 %v73
    %v75 = vpop.xlane.xlu0 %74
    %v76 = vmul.f32 %v75, %v43
    %v77 = vcombine.high %v52, %v52
    %v79 = vmul.f32 %v36, %v77
    %v80 = vsel %vm39, %v79, 0.0
    %81 = vadd.xlane.f32.xlu0 %v80
    %v82 = vpop.xlane.xlu0 %81
    %v83 = vmul.f32 %v82, %v43
    %84 = vrot.lane.b32.xlu0 %v77, 96
    %v85 = vpop.permute.xlu0 %84
    %v87 = vmul.f32 %v36, %v85
    %v88 = vsel %vm39, %v87, 0.0
    %89 = vadd.xlane.f32.xlu0 %v88
    %v90 = vpop.xlane.xlu0 %89
    %v91 = vmul.f32 %v90, %v43
    %92 = vrot.lane.b32.xlu0 %v77, 64
    %v93 = vpop.permute.xlu0 %92
    %v95 = vmul.f32 %v36, %v93
    %v96 = vsel %vm39, %v95, 0.0
    %97 = vadd.xlane.f32.xlu0 %v96
    %v98 = vpop.xlane.xlu0 %97
    %v99 = vmul.f32 %v98, %v43
    %100 = vrot.lane.b32.xlu0 %v77, 32
    %v101 = vpop.permute.xlu0 %100
    %v103 = vmul.f32 %v36, %v101
    %v104 = vsel %vm39, %v103, 0.0
    %105 = vadd.xlane.f32.xlu0 %v104
    %v106 = vpop.xlane.xlu0 %105
    %v107 = vmul.f32 %v106, %v43
    %v108 = vmax.f32 %v44, %v60
    %v109 = vmax.f32 %v108, %v68
    %v110 = vmax.f32 %v109, %v76
    %v111 = vmax.f32 %v110, %v83
    %v112 = vmax.f32 %v111, %v91
    %v113 = vmax.f32 %v112, %v99
    %v114 = vmax.f32 %v113, %v107
    %v115 = vsub.f32 %v44, %v114
    %v116 = vmul.f32 %v115, 1.442695
    %v117 = vpow.pop %v116
    %v118 = vsub.f32 %v60, %v114
    %v119 = vmul.f32 %v118, 1.442695
    %v120 = vpow.pop %v119
    %v121 = vsub.f32 %v68, %v114
    %v122 = vmul.f32 %v121, 1.442695
    %v123 = vpow.pop %v122
    %v124 = vsub.f32 %v76, %v114
    %v125 = vmul.f32 %v124, 1.442695
    %v126 = vpow.pop %v125
    %v127 = vsub.f32 %v83, %v114
    %v128 = vmul.f32 %v127, 1.442695
    %v129 = vpow.pop %v128
    %v130 = vsub.f32 %v91, %v114
    %v131 = vmul.f32 %v130, 1.442695
    %v132 = vpow.pop %v131
    %v133 = vsub.f32 %v99, %v114
    %v134 = vmul.f32 %v133, 1.442695
    %v135 = vpow.pop %v134
    %v136 = vsub.f32 %v107, %v114
    %v137 = vmul.f32 %v136, 1.442695
    %v138 = vpow.pop %v137
    %v139 = vadd.f32 %v117, %v120
    %v140 = vadd.f32 %v139, %v123
    %v141 = vadd.f32 %v140, %v126
    %v142 = vadd.f32 %v141, %v129
    %v143 = vadd.f32 %v142, %v132
    %v144 = vadd.f32 %v143, %v135
    %v145 = vadd.f32 %v144, %v138
    %v146 = vrcp.pop %v145
    %v147 = vmul.f32 1.0, %v146
    %v148 = vmul.f32 %v117, %v147
    %v149 = vmul.f32 %v148, %v37
    %v150 = vmul.f32 %v120, %v147
    %v151 = vmul.f32 %v150, %v54
    %v152 = vadd.f32 %v149, %v151
    %v153 = vmul.f32 %v123, %v147
    %v154 = vmul.f32 %v153, %v62
    %v155 = vadd.f32 %v152, %v154
    %v156 = vmul.f32 %v126, %v147
    %v157 = vmul.f32 %v156, %v70
    %v158 = vadd.f32 %v155, %v157
    %v159 = vmul.f32 %v129, %v147
    %v160 = vmul.f32 %v159, %v77
    %v161 = vadd.f32 %v158, %v160
    %v162 = vmul.f32 %v132, %v147
    %v163 = vmul.f32 %v162, %v85
    %v164 = vadd.f32 %v161, %v163
    %v165 = vmul.f32 %v135, %v147
    %v166 = vmul.f32 %v165, %v93
    %v167 = vadd.f32 %v164, %v166
    %v168 = vmul.f32 %v138, %v147
    %v169 = vmul.f32 %v168, %v101
    %v170 = vadd.f32 %v167, %v169
    %171 = vst.msk [vmem:[#allocation7] sm:$0x3] %vm39, %v170
    // Predicated region
    $region18: #{tpu_custom_call.1} parent=1 // pred_check
      _
    $region19: #{tpu_custom_call.1} parent=1 // pred_check_branch
      %173 = sbr.rel (0) target = $region21
    $region20: #{tpu_custom_call.1} parent=1 // pred_region
      %s175 = ssub.s32 32, 32
      %176 = vsyncadd [#allocation4], %s175
      %s178 = sshll.u32 [#allocation7], 4
      %s179 = int_to_ptr.vmem [resolvable:$true] %s178
      %181 = dma.vmem_to_hbm [thread:$0]  %s179, 32, %s2, [#allocation4]
    $region21: #{tpu_custom_call.1} parent=1 // pred_fallthru
      _
    // Predicated region
    $region22: #{tpu_custom_call.1} parent=1 // pred_check
      _
    $region23: #{tpu_custom_call.1} parent=1 // pred_check_branch
      %183 = sbr.rel (0) target = $region25
    $region24: #{tpu_custom_call.1} parent=1 // pred_region
      %184 = dma.done [#allocation4], 32
    $region25: #{tpu_custom_call.1} parent=1 // pred_fallthru
      _
    %185 = vsyncpa [#allocation3], 1
    %186 = vsyncpa [#allocation6], 1
    %187 = vsyncpa [#allocation4], 1

</llo_original>
